<compile_context>
chip_gen: v7x
topology: tpu7x:2x2x1
jax: 0.10.0
libtpu: 0.0.40
codegen_flags: <defaults>
</compile_context>

<pallas_src>
import functools

import jax
import jax.numpy as jnp
from jax.experimental import pallas as pl
from jax.experimental.pallas import tpu as pltpu


def _critic_kernel(x_ref, w1_ref, b1_ref, w2_ref, b2_ref, w3r_ref, b3_ref,
                   out_ref):
    # Layer 1: (TILE_B, in_dim) @ (in_dim, H) -> f32 accumulate, bias+ReLU in f32.
    h1 = jnp.dot(x_ref[...], w1_ref[...], preferred_element_type=jnp.float32)
    h1 = jnp.maximum(h1 + b1_ref[...], 0.0)

    # Layer 2: cast back to the MXU compute dtype (no-op for f32).
    h2 = jnp.dot(h1.astype(w2_ref.dtype), w2_ref[...],
                 preferred_element_type=jnp.float32)
    h2 = jnp.maximum(h2 + b2_ref[...], 0.0)

    # Layer 3 (out_features == 1): VPU multiply + lane reduction instead of an
    # N=1 MXU matmul.
    q = jnp.sum(h2 * w3r_ref[...], axis=-1, keepdims=True) + b3_ref[...]
    out_ref[...] = q.astype(out_ref.dtype)


@functools.partial(jax.jit, static_argnames=("tile_b", "compute_dtype"))
def critic_forward(state, action, params, *, tile_b=128,
                   compute_dtype=jnp.float32):
    """Pallas forward. state: (B, num_inputs), action: (B, num_actions)."""
    w1, b1, w2, b2, w3_row, b3 = params
    B = state.shape[0]

    # Fuse the concat in the wrapper: one contiguous activation stream.
    x = jnp.concatenate([state, action], axis=1).astype(compute_dtype)
    in_dim = x.shape[1]
    hidden = w2.shape[0]

    # Pad batch so every tile is full (tile_b must be a multiple of 8).
    n_tiles = pl.cdiv(B, tile_b)
    b_pad = n_tiles * tile_b
    if b_pad != B:
        x = jnp.pad(x, ((0, b_pad - B), (0, 0)))

    w1c = w1.astype(compute_dtype)
    w2c = w2.astype(compute_dtype)
    b1f = b1.astype(jnp.float32)
    b2f = b2.astype(jnp.float32)
    w3f = w3_row.astype(jnp.float32)
    b3f = b3.astype(jnp.float32)

    def const_spec(shape):
        return pl.BlockSpec(shape, lambda i: tuple(0 for _ in shape))

    itemsize = jnp.dtype(compute_dtype).itemsize
    flops = 2 * b_pad * (in_dim * hidden + hidden * hidden + hidden)
    bytes_accessed = int(
        b_pad * in_dim * itemsize          # streamed activations
        + b_pad * 4                        # (B, 1) f32 output
        + (w1c.size + w2c.size) * itemsize
        + (b1f.size + b2f.size + w3f.size + b3f.size) * 4)

    out = pl.pallas_call(
        _critic_kernel,
        out_shape=jax.ShapeDtypeStruct((b_pad, 1), jnp.float32),
        grid=(n_tiles,),
        in_specs=[
            pl.BlockSpec((tile_b, in_dim), lambda i: (i, 0)),  # activations: tiled
            const_spec(w1c.shape),                             # weights: resident
            const_spec(b1f.shape),
            const_spec(w2c.shape),
            const_spec(b2f.shape),
            const_spec(w3f.shape),
            const_spec(b3f.shape),
        ],
        out_specs=pl.BlockSpec((tile_b, 1), lambda i: (i, 0)),
        compiler_params=pltpu.CompilerParams(
            dimension_semantics=("parallel",)),
        cost_estimate=pl.CostEstimate(
            flops=flops, transcendentals=0, bytes_accessed=bytes_accessed),
    )(x, w1c, b1f, w2c, b2f, w3f, b3f)

    return out[:B]


def init_params(key, num_inputs, num_actions, hidden_size=32):
    """Deterministic synthetic params. Weights stored (in, out)."""
    ks = jax.random.split(key, 6)
    in_dim = num_inputs + num_actions
    s1 = 1.0 / jnp.sqrt(in_dim)
    s2 = 1.0 / jnp.sqrt(hidden_size)
    w1 = jax.random.uniform(ks[0], (in_dim, hidden_size), jnp.float32, -s1, s1)
    b1 = jax.random.uniform(ks[1], (1, hidden_size), jnp.float32, -s1, s1)
    w2 = jax.random.uniform(ks[2], (hidden_size, hidden_size), jnp.float32, -s2, s2)
    b2 = jax.random.uniform(ks[3], (1, hidden_size), jnp.float32, -s2, s2)
    w3_row = jax.random.uniform(ks[4], (1, hidden_size), jnp.float32, -s2, s2)
    b3 = jax.random.uniform(ks[5], (1, 1), jnp.float32, -s2, s2)
    return (w1, b1, w2, b2, w3_row, b3)


def critic_ref(state, action, params):
    """Pure-JAX reference matching the PyTorch forward exactly."""
    w1, b1, w2, b2, w3_row, b3 = params
    x = jnp.concatenate([state, action], axis=1)
    x = jax.nn.relu(x @ w1 + b1)
    x = jax.nn.relu(x @ w2 + b2)
    return x @ w3_row.T + b3


if __name__ == "__main__":
    NUM_INPUTS, NUM_ACTIONS, HIDDEN = 16, 8, 32

    key = jax.random.PRNGKey(0)
    k_state, k_action, k_params = jax.random.split(key, 3)
    params = init_params(k_params, NUM_INPUTS, NUM_ACTIONS, HIDDEN)

    # Small batch (single grid step after padding to TILE_B).
    B = 8
    state = jax.random.normal(k_state, (B, NUM_INPUTS), jnp.float32)
    action = jax.random.normal(k_action, (B, NUM_ACTIONS), jnp.float32)

    out = jax.block_until_ready(critic_forward(state, action, params))
    ref = critic_ref(state, action, params)
    assert out.shape == (B, 1), out.shape
    assert jnp.allclose(out, ref, atol=1e-5, rtol=1e-5), (out, ref)

    # Multi-tile batch (exercises the grid + batch padding path).
    B2 = 300
    state2 = jax.random.normal(k_state, (B2, NUM_INPUTS), jnp.float32)
    action2 = jax.random.normal(k_action, (B2, NUM_ACTIONS), jnp.float32)
    out2 = jax.block_until_ready(
        critic_forward(state2, action2, params, tile_b=128))
    ref2 = critic_ref(state2, action2, params)
    assert out2.shape == (B2, 1), out2.shape
    assert jnp.allclose(out2, ref2, atol=1e-5, rtol=1e-5)

    # bf16 compute path (weights + streamed activations bf16, f32 accumulate).
    out_bf16 = jax.block_until_ready(
        critic_forward(state2, action2, params, tile_b=128,
                       compute_dtype=jnp.bfloat16))
    assert jnp.allclose(out_bf16, ref2, atol=5e-2, rtol=5e-2)

    print("KERNEL_OK")
</pallas_src>

<mosaic_0001>
module attributes {stable_mosaic.version = 11 : i64} {
  func.func @_critic_kernel(%arg0: i32, %arg1: memref<128x24xf32, #tpu.memory_space<vmem>>, %arg2: memref<24x32xf32, #tpu.memory_space<vmem>>, %arg3: memref<1x32xf32, #tpu.memory_space<vmem>>, %arg4: memref<32x32xf32, #tpu.memory_space<vmem>>, %arg5: memref<1x32xf32, #tpu.memory_space<vmem>>, %arg6: memref<1x32xf32, #tpu.memory_space<vmem>>, %arg7: memref<1x1xf32, #tpu.memory_space<vmem>>, %arg8: memref<128x1xf32, #tpu.memory_space<vmem>>) attributes {dimension_semantics = [#tpu.dimension_semantics<parallel>], iteration_bounds = array<i64: 1>, scalar_prefetch = 0 : i64, scratch_operands = 0 : i64, tpu.core_type = #tpu.core_type<tc>, window_params = [{transform_indices = @transform_0, window_bounds = array<i64: 128, 24>}, {pipeline_mode = #tpu.pipeline_mode<synchronous>, transform_indices = @transform_1, window_bounds = array<i64: 24, 32>}, {pipeline_mode = #tpu.pipeline_mode<synchronous>, transform_indices = @transform_2, window_bounds = array<i64: 1, 32>}, {pipeline_mode = #tpu.pipeline_mode<synchronous>, transform_indices = @transform_3, window_bounds = array<i64: 32, 32>}, {pipeline_mode = #tpu.pipeline_mode<synchronous>, transform_indices = @transform_4, window_bounds = array<i64: 1, 32>}, {pipeline_mode = #tpu.pipeline_mode<synchronous>, transform_indices = @transform_5, window_bounds = array<i64: 1, 32>}, {pipeline_mode = #tpu.pipeline_mode<synchronous>, transform_indices = @transform_6, window_bounds = array<i64: 1, 1>}, {transform_indices = @transform_7, window_bounds = array<i64: 128, 1>}]} {
    %c0 = arith.constant 0 : index
    %c0_0 = arith.constant 0 : index
    %0 = vector.load %arg1[%c0, %c0_0] : memref<128x24xf32, #tpu.memory_space<vmem>>, vector<128x24xf32>
    %c0_1 = arith.constant 0 : index
    %c0_2 = arith.constant 0 : index
    %1 = vector.load %arg2[%c0_1, %c0_2] : memref<24x32xf32, #tpu.memory_space<vmem>>, vector<24x32xf32>
    %cst = arith.constant dense<0.000000e+00> : vector<128x32xf32>
    %2 = tpu.matmul %0, %1, %cst {dimension_numbers = #tpu.dot_dimension_numbers<[1], [0], [0], [1], [0, 0, 1, 1], [], []>} : vector<128x24xf32>, vector<24x32xf32>, vector<128x32xf32> -> vector<128x32xf32>
    %c0_3 = arith.constant 0 : index
    %c0_4 = arith.constant 0 : index
    %3 = vector.load %arg3[%c0_3, %c0_4] : memref<1x32xf32, #tpu.memory_space<vmem>>, vector<1x32xf32>
    %4 = vector.broadcast %3 : vector<1x32xf32> to vector<128x32xf32>
    %5 = arith.addf %2, %4 : vector<128x32xf32>
    %cst_5 = arith.constant 0.000000e+00 : f32
    %6 = vector.broadcast %cst_5 : f32 to vector<128x32xf32>
    %7 = arith.maximumf %5, %6 : vector<128x32xf32>
    %c0_6 = arith.constant 0 : index
    %c0_7 = arith.constant 0 : index
    %8 = vector.load %arg4[%c0_6, %c0_7] : memref<32x32xf32, #tpu.memory_space<vmem>>, vector<32x32xf32>
    %cst_8 = arith.constant dense<0.000000e+00> : vector<128x32xf32>
    %9 = tpu.matmul %7, %8, %cst_8 {dimension_numbers = #tpu.dot_dimension_numbers<[1], [0], [0], [1], [0, 0, 1, 1], [], []>} : vector<128x32xf32>, vector<32x32xf32>, vector<128x32xf32> -> vector<128x32xf32>
    %c0_9 = arith.constant 0 : index
    %c0_10 = arith.constant 0 : index
    %10 = vector.load %arg5[%c0_9, %c0_10] : memref<1x32xf32, #tpu.memory_space<vmem>>, vector<1x32xf32>
    %11 = vector.broadcast %10 : vector<1x32xf32> to vector<128x32xf32>
    %12 = arith.addf %9, %11 : vector<128x32xf32>
    %cst_11 = arith.constant 0.000000e+00 : f32
    %13 = vector.broadcast %cst_11 : f32 to vector<128x32xf32>
    %14 = arith.maximumf %12, %13 : vector<128x32xf32>
    %c0_12 = arith.constant 0 : index
    %c0_13 = arith.constant 0 : index
    %15 = vector.load %arg6[%c0_12, %c0_13] : memref<1x32xf32, #tpu.memory_space<vmem>>, vector<1x32xf32>
    %16 = vector.broadcast %15 : vector<1x32xf32> to vector<128x32xf32>
    %17 = arith.mulf %14, %16 : vector<128x32xf32>
    %cst_14 = arith.constant dense<0.000000e+00> : vector<128xf32>
    %18 = vector.multi_reduction <add>, %17, %cst_14 [1] : vector<128x32xf32> to vector<128xf32>
    %19 = vector.shape_cast %18 : vector<128xf32> to vector<128x1xf32>
    %c0_15 = arith.constant 0 : index
    %c0_16 = arith.constant 0 : index
    %20 = vector.load %arg7[%c0_15, %c0_16] : memref<1x1xf32, #tpu.memory_space<vmem>>, vector<1x1xf32>
    %21 = vector.broadcast %20 : vector<1x1xf32> to vector<128x1xf32>
    %22 = arith.addf %19, %21 : vector<128x1xf32>
    %c0_17 = arith.constant 0 : index
    %c0_18 = arith.constant 0 : index
    %23 = vector.load %arg8[%c0_17, %c0_18] : memref<128x1xf32, #tpu.memory_space<vmem>>, vector<128x1xf32>
    tpu.vector_store %arg8[%c0_17, %c0_18], %22 {strides = array<i32>} : memref<128x1xf32, #tpu.memory_space<vmem>>, vector<128x1xf32>,
    return
  }
  func.func @transform_0(%arg0: i32) -> (i32, i32) {
    %c0_i32 = arith.constant 0 : i32
    %c0_i32_0 = arith.constant 0 : i32
    return %arg0, %c0_i32 : i32, i32
  }
  func.func @transform_1(%arg0: i32) -> (i32, i32) {
    %c0_i32 = arith.constant 0 : i32
    %c0_i32_0 = arith.constant 0 : i32
    %c0_i32_1 = arith.constant 0 : i32
    return %c0_i32, %c0_i32_0 : i32, i32
  }
  func.func @transform_2(%arg0: i32) -> (i32, i32) {
    %c0_i32 = arith.constant 0 : i32
    %c0_i32_0 = arith.constant 0 : i32
    %c0_i32_1 = arith.constant 0 : i32
    return %c0_i32, %c0_i32_0 : i32, i32
  }
  func.func @transform_3(%arg0: i32) -> (i32, i32) {
    %c0_i32 = arith.constant 0 : i32
    %c0_i32_0 = arith.constant 0 : i32
    %c0_i32_1 = arith.constant 0 : i32
    return %c0_i32, %c0_i32_0 : i32, i32
  }
  func.func @transform_4(%arg0: i32) -> (i32, i32) {
    %c0_i32 = arith.constant 0 : i32
    %c0_i32_0 = arith.constant 0 : i32
    %c0_i32_1 = arith.constant 0 : i32
    return %c0_i32, %c0_i32_0 : i32, i32
  }
  func.func @transform_5(%arg0: i32) -> (i32, i32) {
    %c0_i32 = arith.constant 0 : i32
    %c0_i32_0 = arith.constant 0 : i32
    %c0_i32_1 = arith.constant 0 : i32
    return %c0_i32, %c0_i32_0 : i32, i32
  }
  func.func @transform_6(%arg0: i32) -> (i32, i32) {
    %c0_i32 = arith.constant 0 : i32
    %c0_i32_0 = arith.constant 0 : i32
    %c0_i32_1 = arith.constant 0 : i32
    return %c0_i32, %c0_i32_0 : i32, i32
  }
  func.func @transform_7(%arg0: i32) -> (i32, i32) {
    %c0_i32 = arith.constant 0 : i32
    %c0_i32_0 = arith.constant 0 : i32
    return %arg0, %c0_i32 : i32, i32
  }
}

</mosaic_0001>

<llo_original>
// kernel: critic_forward.1
$region0: #{critic_forward.1}
  #allocation0 [shape = 'u32[]', space=smem, size = 0x4, offset = 0x4, fixed_abs, tag = 'smem constant byte address 0x4 - core index']
  #allocation1 [shape = 'u32[144,128]{1,0:T(1,128)}', space=vmem, size = 0x12000, scoped, tag = 'internal scratch']
  #allocation2 [shape = 'f32[1,1]{1,0:T(1,128)S(1)}', space=vmem, size = 0x200, scoped, tag = 'scoped memory for critic_forward.1']
  %s0 = inlined_call_operand.vmem [shape: f32[128,24], index: 0, kind: input, shape index: {}]
  %s1 = inlined_call_operand.vmem [shape: f32[24,32], index: 1, kind: input, shape index: {}]
  %s2 = inlined_call_operand.vmem [shape: f32[1,32], index: 2, kind: input, shape index: {}]
  %s3 = inlined_call_operand.vmem [shape: f32[32,32], index: 3, kind: input, shape index: {}]
  %s4 = inlined_call_operand.vmem [shape: f32[1,32], index: 4, kind: input, shape index: {}]
  %s5 = inlined_call_operand.vmem [shape: f32[1,32], index: 5, kind: input, shape index: {}]
  %s6 = inlined_call_operand.<no memory space> [shape: f32[1,1], index: 6, kind: input, shape index: {}]
  %s7 = inlined_call_operand.vmem [shape: f32[128,1], index: 7, kind: output, shape index: {}]
  %s8 = sld [smem:[#allocation0]]
  $region38: #{critic_forward.1} parent=0
    _
  %s10 = ssub.s32 1, %s8
  %s11 = scalar_select 0, %s10, %s8
  %v12 = vstv %s6
  %13 = vst [vmem:[#allocation2] sm:$0x1] %v12
  // Predicated region
  $region2: #{critic_forward.1} parent=0 // pred_check
    _
  $region3: #{critic_forward.1} parent=0 // pred_check_branch
    %15 = sbr.rel (0) target = $region5
  $region4: #{critic_forward.1} parent=0 // pred_region
    _
  $region5: #{critic_forward.1} parent=0 // pred_fallthru
    _
  // Predicated region
  $region6: #{critic_forward.1} parent=0 // pred_check
    _
  $region7: #{critic_forward.1} parent=0 // pred_check_branch
    %17 = sbr.rel (0) target = $region9
  $region8: #{critic_forward.1} parent=0 // pred_region
    _
  $region9: #{critic_forward.1} parent=0 // pred_fallthru
    _
  // Predicated region
  $region10: #{critic_forward.1} parent=0 // pred_check
    _
  $region11: #{critic_forward.1} parent=0 // pred_check_branch
    %19 = sbr.rel (0) target = $region13
  $region12: #{critic_forward.1} parent=0 // pred_region
    _
  $region13: #{critic_forward.1} parent=0 // pred_fallthru
    _
  // Predicated region
  $region14: #{critic_forward.1} parent=0 // pred_check
    _
  $region15: #{critic_forward.1} parent=0 // pred_check_branch
    %21 = sbr.rel (0) target = $region17
  $region16: #{critic_forward.1} parent=0 // pred_region
    _
  $region17: #{critic_forward.1} parent=0 // pred_fallthru
    _
  // Predicated region
  $region18: #{critic_forward.1} parent=0 // pred_check
    _
  $region19: #{critic_forward.1} parent=0 // pred_check_branch
    %23 = sbr.rel (0) target = $region21
  $region20: #{critic_forward.1} parent=0 // pred_region
    _
  $region21: #{critic_forward.1} parent=0 // pred_fallthru
    _
  // Predicated region
  $region22: #{critic_forward.1} parent=0 // pred_check
    _
  $region23: #{critic_forward.1} parent=0 // pred_check_branch
    %25 = sbr.rel (0) target = $region25
  $region24: #{critic_forward.1} parent=0 // pred_region
    _
  $region25: #{critic_forward.1} parent=0 // pred_fallthru
    _
  // Predicated region
  $region26: #{critic_forward.1} parent=0 // pred_check
    _
  $region27: #{critic_forward.1} parent=0 // pred_check_branch
    %27 = sbr.rel (0) target = $region29
  $region28: #{critic_forward.1} parent=0 // pred_region
    _
  $region29: #{critic_forward.1} parent=0 // pred_fallthru
    _
  %v28 = vld [vmem:[%s0] sm:$0xff]
  %v29 = vld [vmem:[%s0 + $0x8] sm:$0xff]
  %v30 = vld [vmem:[%s0 + $0x10] sm:$0xff]
  %v31 = vld [vmem:[%s0 + $0x18] sm:$0xff]
  %v32 = vld [vmem:[%s0 + $0x20] sm:$0xff]
  %v33 = vld [vmem:[%s0 + $0x28] sm:$0xff]
  %v34 = vld [vmem:[%s0 + $0x30] sm:$0xff]
  %v35 = vld [vmem:[%s0 + $0x38] sm:$0xff]
  %v36 = vld [vmem:[%s0 + $0x40] sm:$0xff]
  %v37 = vld [vmem:[%s0 + $0x48] sm:$0xff]
  %v38 = vld [vmem:[%s0 + $0x50] sm:$0xff]
  %v39 = vld [vmem:[%s0 + $0x58] sm:$0xff]
  %v40 = vld [vmem:[%s0 + $0x60] sm:$0xff]
  %v41 = vld [vmem:[%s0 + $0x68] sm:$0xff]
  %v42 = vld [vmem:[%s0 + $0x70] sm:$0xff]
  %v43 = vld [vmem:[%s0 + $0x78] sm:$0xff]
  %v44 = vld [vmem:[%s1] sm:$0xff]
  %v45 = vld [vmem:[%s1 + $0x8] sm:$0xff]
  %v46 = vld [vmem:[%s1 + $0x10] sm:$0xff]
  %v47 = vld [vmem:[%s2] sm:$0x1]
  %v49 = vlaneseq
  %v50 = vshrl.u32 %v49, 7
  %v51 = vsub.s32 0, %v50
  %v52 = vrot.slane %v47, %v51
  %vm54 = vcmask 195584
  %v56 = vsel %vm54, %v28, 0
  %v59 = vsel %vm54, %v29, 0
  %v62 = vsel %vm54, %v30, 0
  %v65 = vsel %vm54, %v31, 0
  %v68 = vsel %vm54, %v32, 0
  %v71 = vsel %vm54, %v33, 0
  %v74 = vsel %vm54, %v34, 0
  %v77 = vsel %vm54, %v35, 0
  %v80 = vsel %vm54, %v36, 0
  %v83 = vsel %vm54, %v37, 0
  %v86 = vsel %vm54, %v38, 0
  %v89 = vsel %vm54, %v39, 0
  %v92 = vsel %vm54, %v40, 0
  %v95 = vsel %vm54, %v41, 0
  %v98 = vsel %vm54, %v42, 0
  %v101 = vsel %vm54, %v43, 0
  %103 = vmatprep.subr.mxu0 0.0
  %104 = vmatpush1.msra.mxu0 %v44
  %105 = vmatprep.subr.mxu0 0.0
  %106 = vmatpush1.msra.mxu0 %v45
  %107 = vmatprep.subr.mxu0 0.0
  %108 = vmatpush1.msra.mxu0 %v46
  %109 = vmatprep.subr.mxu0 0.0
  %110 = vmatpush1.msra.mxu0 0.0
  %111 = vmatprep.subr.mxu0 0.0
  %112 = vmatpush1.msra.mxu0 0.0
  %113 = vmatprep.subr.mxu0 0.0
  %114 = vmatpush1.msra.mxu0 0.0
  %115 = vmatprep.subr.mxu0 0.0
  %116 = vmatpush1.msra.mxu0 0.0
  %117 = vmatprep.subr.mxu0 0.0
  %118 = vmatpush1.msra.mxu0 0.0
  %119 = vmatprep.subr.mxu0 0.0
  %120 = vmatpush1.msra.mxu0 0.0
  %121 = vmatprep.subr.mxu0 0.0
  %122 = vmatpush1.msra.mxu0 0.0
  %123 = vmatprep.subr.mxu0 0.0
  %124 = vmatpush1.msra.mxu0 0.0
  %125 = vmatprep.subr.mxu0 0.0
  %126 = vmatpush1.msra.mxu0 0.0
  %127 = vmatprep.subr.mxu0 0.0
  %128 = vmatpush1.msra.mxu0 0.0
  %129 = vmatprep.subr.mxu0 0.0
  %130 = vmatpush1.msra.mxu0 0.0
  %131 = vmatprep.subr.mxu0 0.0
  %132 = vmatpush1.msra.mxu0 0.0
  %133 = vmatprep.subr.mxu0 0.0
  %134 = vmatpush1.msra.mxu0 0.0
  %135 = vmatprep.subr.mxu0 0.0
  %136 = vmatpush1.msra.mxu0 0.0
  %137 = vmatprep.subr.mxu0 0.0
  %138 = vmatpush1.msra.mxu0 0.0
  %139 = vmatprep.subr.mxu0 0.0
  %140 = vmatpush1.msra.mxu0 0.0
  %141 = vmatprep.subr.mxu0 0.0
  %142 = vmatpush1.msra.mxu0 0.0
  %143 = vmatprep.subr.mxu0 0.0
  %144 = vmatpush1.msra.mxu0 0.0
  %145 = vmatprep.subr.mxu0 0.0
  %146 = vmatpush1.msra.mxu0 0.0
  %147 = vmatprep.subr.mxu0 0.0
  %148 = vmatpush1.msra.mxu0 0.0
  %149 = vmatprep.subr.mxu0 0.0
  %150 = vmatpush1.msra.mxu0 0.0
  %151 = vmatprep.subr.mxu0 0.0
  %152 = vmatpush1.msra.mxu0 0.0
  %153 = vmatprep.subr.mxu0 0.0
  %154 = vmatpush1.msra.mxu0 0.0
  %155 = vmatprep.subr.mxu0 0.0
  %156 = vmatpush1.msra.mxu0 0.0
  %157 = vmatprep.subr.mxu0 0.0
  %158 = vmatpush1.msra.mxu0 0.0
  %159 = vmatprep.subr.mxu0 0.0
  %160 = vmatpush1.msra.mxu0 0.0
  %161 = vmatprep.subr.mxu0 0.0
  %162 = vmatpush1.msra.mxu0 0.0
  %163 = vmatprep.subr.mxu0 0.0
  %164 = vmatpush1.msra.mxu0 0.0
  %165 = vmatprep.subr.mxu0 0.0
  %166 = vmatpush1.msra.mxu0 0.0
  %167 = vmatprep.mubr.f32.mxu0 0.0
  %168 = vmatmul.mubr.f32.gmra.mrb[0].mxu0 %v56
  %v169 = vpop.f32.mrb[0].mxu0
  %v170 = vadd.f32 %v52, %v169
  %v171 = vpop.f32.mrb[0].mxu0
  %172 = vmatprep.mubr.f32.mxu0 0.0
  %173 = vmatmul.mubr.f32.gmra.mrb[0].mxu0 %v59
  %v174 = vpop.f32.mrb[0].mxu0
  %v175 = vadd.f32 %v52, %v174
  %v176 = vpop.f32.mrb[0].mxu0
  %177 = vmatprep.mubr.f32.mxu0 0.0
  %178 = vmatmul.mubr.f32.gmra.mrb[0].mxu0 %v62
  %v179 = vpop.f32.mrb[0].mxu0
  %v180 = vadd.f32 %v52, %v179
  %v181 = vpop.f32.mrb[0].mxu0
  %182 = vmatprep.mubr.f32.mxu0 0.0
  %183 = vmatmul.mubr.f32.gmra.mrb[0].mxu0 %v65
  %v184 = vpop.f32.mrb[0].mxu0
  %v185 = vadd.f32 %v52, %v184
  %v186 = vpop.f32.mrb[0].mxu0
  %187 = vmatprep.mubr.f32.mxu0 0.0
  %188 = vmatmul.mubr.f32.gmra.mrb[0].mxu0 %v68
  %v189 = vpop.f32.mrb[0].mxu0
  %v190 = vadd.f32 %v52, %v189
  %v191 = vpop.f32.mrb[0].mxu0
  %192 = vmatprep.mubr.f32.mxu0 0.0
  %193 = vmatmul.mubr.f32.gmra.mrb[0].mxu0 %v71
  %v194 = vpop.f32.mrb[0].mxu0
  %v195 = vadd.f32 %v52, %v194
  %v196 = vpop.f32.mrb[0].mxu0
  %197 = vmatprep.mubr.f32.mxu0 0.0
  %198 = vmatmul.mubr.f32.gmra.mrb[0].mxu0 %v74
  %v199 = vpop.f32.mrb[0].mxu0
  %v200 = vadd.f32 %v52, %v199
  %v201 = vpop.f32.mrb[0].mxu0
  %202 = vmatprep.mubr.f32.mxu0 0.0
  %203 = vmatmul.mubr.f32.gmra.mrb[0].mxu0 %v77
  %v204 = vpop.f32.mrb[0].mxu0
  %v205 = vadd.f32 %v52, %v204
  %v206 = vpop.f32.mrb[0].mxu0
  %207 = vmatprep.mubr.f32.mxu0 0.0
  %208 = vmatmul.mubr.f32.gmra.mrb[0].mxu0 %v80
  %v209 = vpop.f32.mrb[0].mxu0
  %v210 = vadd.f32 %v52, %v209
  %v211 = vpop.f32.mrb[0].mxu0
  %212 = vmatprep.mubr.f32.mxu0 0.0
  %213 = vmatmul.mubr.f32.gmra.mrb[0].mxu0 %v83
  %v214 = vpop.f32.mrb[0].mxu0
  %v215 = vadd.f32 %v52, %v214
  %v216 = vpop.f32.mrb[0].mxu0
  %217 = vmatprep.mubr.f32.mxu0 0.0
  %218 = vmatmul.mubr.f32.gmra.mrb[0].mxu0 %v86
  %v219 = vpop.f32.mrb[0].mxu0
  %v220 = vadd.f32 %v52, %v219
  %v221 = vpop.f32.mrb[0].mxu0
  %222 = vmatprep.mubr.f32.mxu0 0.0
  %223 = vmatmul.mubr.f32.gmra.mrb[0].mxu0 %v89
  %v224 = vpop.f32.mrb[0].mxu0
  %v225 = vadd.f32 %v52, %v224
  %v226 = vpop.f32.mrb[0].mxu0
  %227 = vmatprep.mubr.f32.mxu0 0.0
  %228 = vmatmul.mubr.f32.gmra.mrb[0].mxu0 %v92
  %v229 = vpop.f32.mrb[0].mxu0
  %v230 = vadd.f32 %v52, %v229
  %v231 = vpop.f32.mrb[0].mxu0
  %232 = vmatprep.mubr.f32.mxu0 0.0
  %233 = vmatmul.mubr.f32.gmra.mrb[0].mxu0 %v95
  %v234 = vpop.f32.mrb[0].mxu0
  %v235 = vadd.f32 %v52, %v234
  %v236 = vpop.f32.mrb[0].mxu0
  %237 = vmatprep.mubr.f32.mxu0 0.0
  %238 = vmatmul.mubr.f32.gmra.mrb[0].mxu0 %v98
  %v239 = vpop.f32.mrb[0].mxu0
  %v240 = vadd.f32 %v52, %v239
  %v241 = vpop.f32.mrb[0].mxu0
  %242 = vmatprep.mubr.f32.mxu0 0.0
  %243 = vmatmul.mubr.f32.gmra.mrb[0].mxu0 %v101
  %v244 = vpop.f32.mrb[0].mxu0
  %v245 = vadd.f32 %v52, %v244
  %v246 = vpop.f32.mrb[0].mxu0
  %247 = vdwg.mxu0
  %v248 = vmax.f32 %v170, 0.0
  %v249 = vmax.f32 %v175, 0.0
  %v250 = vmax.f32 %v180, 0.0
  %v251 = vmax.f32 %v185, 0.0
  %v252 = vmax.f32 %v190, 0.0
  %v253 = vmax.f32 %v195, 0.0
  %v254 = vmax.f32 %v200, 0.0
  %v255 = vmax.f32 %v205, 0.0
  %v256 = vmax.f32 %v210, 0.0
  %v257 = vmax.f32 %v215, 0.0
  %v258 = vmax.f32 %v220, 0.0
  %v259 = vmax.f32 %v225, 0.0
  %v260 = vmax.f32 %v230, 0.0
  %v261 = vmax.f32 %v235, 0.0
  %v262 = vmax.f32 %v240, 0.0
  %v263 = vmax.f32 %v245, 0.0
  %v264 = vld [vmem:[%s3] sm:$0xff]
  %v265 = vld [vmem:[%s3 + $0x8] sm:$0xff]
  %v266 = vld [vmem:[%s3 + $0x10] sm:$0xff]
  %v267 = vld [vmem:[%s3 + $0x18] sm:$0xff]
  %v268 = vld [vmem:[%s4] sm:$0x1]
  %v270 = vlaneseq
  %v271 = vshrl.u32 %v270, 7
  %v272 = vsub.s32 0, %v271
  %v273 = vrot.slane %v268, %v272
  %vm275 = vcmask 261120
  %v277 = vsel %vm275, %v248, 0
  %v280 = vsel %vm275, %v249, 0
  %v283 = vsel %vm275, %v250, 0
  %v286 = vsel %vm275, %v251, 0
  %v289 = vsel %vm275, %v252, 0
  %v292 = vsel %vm275, %v253, 0
  %v295 = vsel %vm275, %v254, 0
  %v298 = vsel %vm275, %v255, 0
  %v301 = vsel %vm275, %v256, 0
  %v304 = vsel %vm275, %v257, 0
  %v307 = vsel %vm275, %v258, 0
  %v310 = vsel %vm275, %v259, 0
  %v313 = vsel %vm275, %v260, 0
  %v316 = vsel %vm275, %v261, 0
  %v319 = vsel %vm275, %v262, 0
  %v322 = vsel %vm275, %v263, 0
  %324 = vmatprep.subr.mxu0 0.0
  %325 = vmatpush1.msra.mxu0 %v264
  %326 = vmatprep.subr.mxu0 0.0
  %327 = vmatpush1.msra.mxu0 %v265
  %328 = vmatprep.subr.mxu0 0.0
  %329 = vmatpush1.msra.mxu0 %v266
  %330 = vmatprep.subr.mxu0 0.0
  %331 = vmatpush1.msra.mxu0 %v267
  %332 = vmatprep.subr.mxu0 0.0
  %333 = vmatpush1.msra.mxu0 0.0
  %334 = vmatprep.subr.mxu0 0.0
  %335 = vmatpush1.msra.mxu0 0.0
  %336 = vmatprep.subr.mxu0 0.0
  %337 = vmatpush1.msra.mxu0 0.0
  %338 = vmatprep.subr.mxu0 0.0
  %339 = vmatpush1.msra.mxu0 0.0
  %340 = vmatprep.subr.mxu0 0.0
  %341 = vmatpush1.msra.mxu0 0.0
  %342 = vmatprep.subr.mxu0 0.0
  %343 = vmatpush1.msra.mxu0 0.0
  %344 = vmatprep.subr.mxu0 0.0
  %345 = vmatpush1.msra.mxu0 0.0
  %346 = vmatprep.subr.mxu0 0.0
  %347 = vmatpush1.msra.mxu0 0.0
  %348 = vmatprep.subr.mxu0 0.0
  %349 = vmatpush1.msra.mxu0 0.0
  %350 = vmatprep.subr.mxu0 0.0
  %351 = vmatpush1.msra.mxu0 0.0
  %352 = vmatprep.subr.mxu0 0.0
  %353 = vmatpush1.msra.mxu0 0.0
  %354 = vmatprep.subr.mxu0 0.0
  %355 = vmatpush1.msra.mxu0 0.0
  %356 = vmatprep.subr.mxu0 0.0
  %357 = vmatpush1.msra.mxu0 0.0
  %358 = vmatprep.subr.mxu0 0.0
  %359 = vmatpush1.msra.mxu0 0.0
  %360 = vmatprep.subr.mxu0 0.0
  %361 = vmatpush1.msra.mxu0 0.0
  %362 = vmatprep.subr.mxu0 0.0
  %363 = vmatpush1.msra.mxu0 0.0
  %364 = vmatprep.subr.mxu0 0.0
  %365 = vmatpush1.msra.mxu0 0.0
  %366 = vmatprep.subr.mxu0 0.0
  %367 = vmatpush1.msra.mxu0 0.0
  %368 = vmatprep.subr.mxu0 0.0
  %369 = vmatpush1.msra.mxu0 0.0
  %370 = vmatprep.subr.mxu0 0.0
  %371 = vmatpush1.msra.mxu0 0.0
  %372 = vmatprep.subr.mxu0 0.0
  %373 = vmatpush1.msra.mxu0 0.0
  %374 = vmatprep.subr.mxu0 0.0
  %375 = vmatpush1.msra.mxu0 0.0
  %376 = vmatprep.subr.mxu0 0.0
  %377 = vmatpush1.msra.mxu0 0.0
  %378 = vmatprep.subr.mxu0 0.0
  %379 = vmatpush1.msra.mxu0 0.0
  %380 = vmatprep.subr.mxu0 0.0
  %381 = vmatpush1.msra.mxu0 0.0
  %382 = vmatprep.subr.mxu0 0.0
  %383 = vmatpush1.msra.mxu0 0.0
  %384 = vmatprep.subr.mxu0 0.0
  %385 = vmatpush1.msra.mxu0 0.0
  %386 = vmatprep.subr.mxu0 0.0
  %387 = vmatpush1.msra.mxu0 0.0
  %388 = vmatprep.mubr.f32.mxu0 0.0
  %389 = vmatmul.mubr.f32.gmra.mrb[0].mxu0 %v277
  %v390 = vpop.f32.mrb[0].mxu0
  %v391 = vadd.f32 %v273, %v390
  %v392 = vpop.f32.mrb[0].mxu0
  %393 = vmatprep.mubr.f32.mxu0 0.0
  %394 = vmatmul.mubr.f32.gmra.mrb[0].mxu0 %v280
  %v395 = vpop.f32.mrb[0].mxu0
  %v396 = vadd.f32 %v273, %v395
  %v397 = vpop.f32.mrb[0].mxu0
  %398 = vmatprep.mubr.f32.mxu0 0.0
  %399 = vmatmul.mubr.f32.gmra.mrb[0].mxu0 %v283
  %v400 = vpop.f32.mrb[0].mxu0
  %v401 = vadd.f32 %v273, %v400
  %v402 = vpop.f32.mrb[0].mxu0
  %403 = vmatprep.mubr.f32.mxu0 0.0
  %404 = vmatmul.mubr.f32.gmra.mrb[0].mxu0 %v286
  %v405 = vpop.f32.mrb[0].mxu0
  %v406 = vadd.f32 %v273, %v405
  %v407 = vpop.f32.mrb[0].mxu0
  %408 = vmatprep.mubr.f32.mxu0 0.0
  %409 = vmatmul.mubr.f32.gmra.mrb[0].mxu0 %v289
  %v410 = vpop.f32.mrb[0].mxu0
  %v411 = vadd.f32 %v273, %v410
  %v412 = vpop.f32.mrb[0].mxu0
  %413 = vmatprep.mubr.f32.mxu0 0.0
  %414 = vmatmul.mubr.f32.gmra.mrb[0].mxu0 %v292
  %v415 = vpop.f32.mrb[0].mxu0
  %v416 = vadd.f32 %v273, %v415
  %v417 = vpop.f32.mrb[0].mxu0
  %418 = vmatprep.mubr.f32.mxu0 0.0
  %419 = vmatmul.mubr.f32.gmra.mrb[0].mxu0 %v295
  %v420 = vpop.f32.mrb[0].mxu0
  %v421 = vadd.f32 %v273, %v420
  %v422 = vpop.f32.mrb[0].mxu0
  %423 = vmatprep.mubr.f32.mxu0 0.0
  %424 = vmatmul.mubr.f32.gmra.mrb[0].mxu0 %v298
  %v425 = vpop.f32.mrb[0].mxu0
  %v426 = vadd.f32 %v273, %v425
  %v427 = vpop.f32.mrb[0].mxu0
  %428 = vmatprep.mubr.f32.mxu0 0.0
  %429 = vmatmul.mubr.f32.gmra.mrb[0].mxu0 %v301
  %v430 = vpop.f32.mrb[0].mxu0
  %v431 = vadd.f32 %v273, %v430
  %v432 = vpop.f32.mrb[0].mxu0
  %433 = vmatprep.mubr.f32.mxu0 0.0
  %434 = vmatmul.mubr.f32.gmra.mrb[0].mxu0 %v304
  %v435 = vpop.f32.mrb[0].mxu0
  %v436 = vadd.f32 %v273, %v435
  %v437 = vpop.f32.mrb[0].mxu0
  %438 = vmatprep.mubr.f32.mxu0 0.0
  %439 = vmatmul.mubr.f32.gmra.mrb[0].mxu0 %v307
  %v440 = vpop.f32.mrb[0].mxu0
  %v441 = vadd.f32 %v273, %v440
  %v442 = vpop.f32.mrb[0].mxu0
  %443 = vmatprep.mubr.f32.mxu0 0.0
  %444 = vmatmul.mubr.f32.gmra.mrb[0].mxu0 %v310
  %v445 = vpop.f32.mrb[0].mxu0
  %v446 = vadd.f32 %v273, %v445
  %v447 = vpop.f32.mrb[0].mxu0
  %448 = vmatprep.mubr.f32.mxu0 0.0
  %449 = vmatmul.mubr.f32.gmra.mrb[0].mxu0 %v313
  %v450 = vpop.f32.mrb[0].mxu0
  %v451 = vadd.f32 %v273, %v450
  %v452 = vpop.f32.mrb[0].mxu0
  %453 = vmatprep.mubr.f32.mxu0 0.0
  %454 = vmatmul.mubr.f32.gmra.mrb[0].mxu0 %v316
  %v455 = vpop.f32.mrb[0].mxu0
  %v456 = vadd.f32 %v273, %v455
  %v457 = vpop.f32.mrb[0].mxu0
  %458 = vmatprep.mubr.f32.mxu0 0.0
  %459 = vmatmul.mubr.f32.gmra.mrb[0].mxu0 %v319
  %v460 = vpop.f32.mrb[0].mxu0
  %v461 = vadd.f32 %v273, %v460
  %v462 = vpop.f32.mrb[0].mxu0
  %463 = vmatprep.mubr.f32.mxu0 0.0
  %464 = vmatmul.mubr.f32.gmra.mrb[0].mxu0 %v322
  %v465 = vpop.f32.mrb[0].mxu0
  %v466 = vadd.f32 %v273, %v465
  %v467 = vpop.f32.mrb[0].mxu0
  %468 = vdwg.mxu0
  %v469 = vmax.f32 %v391, 0.0
  %v470 = vmax.f32 %v396, 0.0
  %v471 = vmax.f32 %v401, 0.0
  %v472 = vmax.f32 %v406, 0.0
  %v473 = vmax.f32 %v411, 0.0
  %v474 = vmax.f32 %v416, 0.0
  %v475 = vmax.f32 %v421, 0.0
  %v476 = vmax.f32 %v426, 0.0
  %v477 = vmax.f32 %v431, 0.0
  %v478 = vmax.f32 %v436, 0.0
  %v479 = vmax.f32 %v441, 0.0
  %v480 = vmax.f32 %v446, 0.0
  %v481 = vmax.f32 %v451, 0.0
  %v482 = vmax.f32 %v456, 0.0
  %v483 = vmax.f32 %v461, 0.0
  %v484 = vmax.f32 %v466, 0.0
  %v485 = vld [vmem:[%s5] sm:$0x1]
  %v487 = vlaneseq
  %v488 = vshrl.u32 %v487, 7
  %v489 = vsub.s32 0, %v488
  %v490 = vrot.slane %v485, %v489
  %v492 = vmul.f32 %v469, %v490
  %v493 = vmul.f32 %v470, %v490
  %v494 = vmul.f32 %v471, %v490
  %v495 = vmul.f32 %v472, %v490
  %v496 = vmul.f32 %v473, %v490
  %v497 = vmul.f32 %v474, %v490
  %v498 = vmul.f32 %v475, %v490
  %v499 = vmul.f32 %v476, %v490
  %v500 = vmul.f32 %v477, %v490
  %v501 = vmul.f32 %v478, %v490
  %v502 = vmul.f32 %v479, %v490
  %v503 = vmul.f32 %v480, %v490
  %v504 = vmul.f32 %v481, %v490
  %v505 = vmul.f32 %v482, %v490
  %v506 = vmul.f32 %v483, %v490
  %v507 = vmul.f32 %v484, %v490
  %v508 = vsel %vm275, %v492, 0.0
  %509 = vadd.xlane.f32.xlu0 %v508
  %v510 = vpop.xlane.xlu0 %509
  %v511 = vsel %vm275, %v493, 0.0
  %512 = vadd.xlane.f32.xlu0 %v511
  %v513 = vpop.xlane.xlu0 %512
  %v514 = vsel %vm275, %v494, 0.0
  %515 = vadd.xlane.f32.xlu0 %v514
  %v516 = vpop.xlane.xlu0 %515
  %v517 = vsel %vm275, %v495, 0.0
  %518 = vadd.xlane.f32.xlu0 %v517
  %v519 = vpop.xlane.xlu0 %518
  %v520 = vsel %vm275, %v496, 0.0
  %521 = vadd.xlane.f32.xlu0 %v520
  %v522 = vpop.xlane.xlu0 %521
  %v523 = vsel %vm275, %v497, 0.0
  %524 = vadd.xlane.f32.xlu0 %v523
  %v525 = vpop.xlane.xlu0 %524
  %v526 = vsel %vm275, %v498, 0.0
  %527 = vadd.xlane.f32.xlu0 %v526
  %v528 = vpop.xlane.xlu0 %527
  %v529 = vsel %vm275, %v499, 0.0
  %530 = vadd.xlane.f32.xlu0 %v529
  %v531 = vpop.xlane.xlu0 %530
  %v532 = vsel %vm275, %v500, 0.0
  %533 = vadd.xlane.f32.xlu0 %v532
  %v534 = vpop.xlane.xlu0 %533
  %v535 = vsel %vm275, %v501, 0.0
  %536 = vadd.xlane.f32.xlu0 %v535
  %v537 = vpop.xlane.xlu0 %536
  %v538 = vsel %vm275, %v502, 0.0
  %539 = vadd.xlane.f32.xlu0 %v538
  %v540 = vpop.xlane.xlu0 %539
  %v541 = vsel %vm275, %v503, 0.0
  %542 = vadd.xlane.f32.xlu0 %v541
  %v543 = vpop.xlane.xlu0 %542
  %v544 = vsel %vm275, %v504, 0.0
  %545 = vadd.xlane.f32.xlu0 %v544
  %v546 = vpop.xlane.xlu0 %545
  %v547 = vsel %vm275, %v505, 0.0
  %548 = vadd.xlane.f32.xlu0 %v547
  %v549 = vpop.xlane.xlu0 %548
  %v550 = vsel %vm275, %v506, 0.0
  %551 = vadd.xlane.f32.xlu0 %v550
  %v552 = vpop.xlane.xlu0 %551
  %v553 = vsel %vm275, %v507, 0.0
  %554 = vadd.xlane.f32.xlu0 %v553
  %v555 = vpop.xlane.xlu0 %554
  %v556 = vld [vmem:[#allocation2] sm:$0x1]
  %v558 = vlaneseq
  %v559 = vshrl.u32 %v558, 7
  %v560 = vsub.s32 0, %v559
  %v561 = vrot.slane %v556, %v560
  %v563 = vadd.f32 %v510, %v561
  %v564 = vadd.f32 %v513, %v561
  %v565 = vadd.f32 %v516, %v561
  %v566 = vadd.f32 %v519, %v561
  %v567 = vadd.f32 %v522, %v561
  %v568 = vadd.f32 %v525, %v561
  %v569 = vadd.f32 %v528, %v561
  %v570 = vadd.f32 %v531, %v561
  %v571 = vadd.f32 %v534, %v561
  %v572 = vadd.f32 %v537, %v561
  %v573 = vadd.f32 %v540, %v561
  %v574 = vadd.f32 %v543, %v561
  %v575 = vadd.f32 %v546, %v561
  %v576 = vadd.f32 %v549, %v561
  %v577 = vadd.f32 %v552, %v561
  %v578 = vadd.f32 %v555, %v561
  %vm579 = vcmask 7168
  %580 = vst.msk [vmem:[%s7] sm:$0xff] %vm579, %v563
  %581 = vst.msk [vmem:[%s7 + $0x8] sm:$0xff] %vm579, %v564
  %582 = vst.msk [vmem:[%s7 + $0x10] sm:$0xff] %vm579, %v565
  %583 = vst.msk [vmem:[%s7 + $0x18] sm:$0xff] %vm579, %v566
  %584 = vst.msk [vmem:[%s7 + $0x20] sm:$0xff] %vm579, %v567
  %585 = vst.msk [vmem:[%s7 + $0x28] sm:$0xff] %vm579, %v568
  %586 = vst.msk [vmem:[%s7 + $0x30] sm:$0xff] %vm579, %v569
  %587 = vst.msk [vmem:[%s7 + $0x38] sm:$0xff] %vm579, %v570
  %588 = vst.msk [vmem:[%s7 + $0x40] sm:$0xff] %vm579, %v571
  %589 = vst.msk [vmem:[%s7 + $0x48] sm:$0xff] %vm579, %v572
  %590 = vst.msk [vmem:[%s7 + $0x50] sm:$0xff] %vm579, %v573
  %591 = vst.msk [vmem:[%s7 + $0x58] sm:$0xff] %vm579, %v574
  %592 = vst.msk [vmem:[%s7 + $0x60] sm:$0xff] %vm579, %v575
  %593 = vst.msk [vmem:[%s7 + $0x68] sm:$0xff] %vm579, %v576
  %594 = vst.msk [vmem:[%s7 + $0x70] sm:$0xff] %vm579, %v577
  %595 = vst.msk [vmem:[%s7 + $0x78] sm:$0xff] %vm579, %v578
  // Predicated region
  $region30: #{critic_forward.1} parent=0 // pred_check
    _
  $region31: #{critic_forward.1} parent=0 // pred_check_branch
    %597 = sbr.rel (0) target = $region33
  $region32: #{critic_forward.1} parent=0 // pred_region
    _
  $region33: #{critic_forward.1} parent=0 // pred_fallthru
    _
  // Predicated region
  $region34: #{critic_forward.1} parent=0 // pred_check
    _
  $region35: #{critic_forward.1} parent=0 // pred_check_branch
    %599 = sbr.rel (0) target = $region37
  $region36: #{critic_forward.1} parent=0 // pred_region
    _
  $region37: #{critic_forward.1} parent=0 // pred_fallthru
    _

</llo_original>
